<compile_context>
chip_gen: v7x
topology: tpu7x:2x2x1
jax: 0.10.0
libtpu: 0.0.40
codegen_flags: <defaults>
</compile_context>

<pallas_src>
import jax
import jax.numpy as jnp
from jax.experimental import pallas as pl
from jax.experimental.pallas import tpu as pltpu


LANE = 128  # pad hidden/class dims to this many lanes.  Use 256 to fully fill the
            # 2x256x256 MXU on v6e/v7x when the real dims are large.


def _round_up(x, m):
    return (x + m - 1) // m * m


def _gcn_fused_kernel(adj0_ref, x_ref, w1_ref, b1_ref, w2_ref, b2_ref,
                      adj1_ref, out_ref, s2_ref):
    """Fused 2-layer GCN.  Grid: (Mp // tm,) over row tiles of adj1 / the output.

    adj0_ref: [n1, n0]  bf16  (whole array, constant block index -> DMA'd once)
    x_ref:    [n0, F ]  bf16
    w1_ref:   [F,  Hp]  bf16  (Hp = nhid padded to LANE)
    b1_ref:   [1,  Hp]  f32
    w2_ref:   [Hp, Cp]  bf16  (Cp = nclass padded to LANE)
    b2_ref:   [1,  Cp]  f32
    adj1_ref: [tm, n1]  bf16  (row tile of the layer-2 adjacency)
    out_ref:  [tm, Cp]  f32
    s2_ref:   [n1, Cp]  bf16  persistent VMEM scratch holding (h1 @ W2)
    """
    # ---- Layer 1 (+ fold into the layer-2 "support"): computed once, reused by
    #      every output-row tile.
    @pl.when(pl.program_id(0) == 0)
    def _():
        s1 = jnp.dot(x_ref[...], w1_ref[...],
                     preferred_element_type=jnp.float32)                 # [n0, Hp] f32
        z1 = jnp.dot(adj0_ref[...], s1.astype(jnp.bfloat16),
                     preferred_element_type=jnp.float32) + b1_ref[...]   # [n1, Hp] f32
        h1 = jnp.maximum(z1, 0.0)                                        # ReLU (f32)
        # TODO(synk): training-mode dropout not implemented (inference path); it
        # would use pltpu.prng_seed + pltpu.prng_random_bits on h1 here.
        # NOTE: for very large n0/nfeat this block would need its own inner tiling
        # (pltpu.emit_pipeline); at FastGCN sample sizes it fits VMEM comfortably.
        s2 = jnp.dot(h1.astype(jnp.bfloat16), w2_ref[...],
                     preferred_element_type=jnp.float32)                  # [n1, Cp] f32
        s2_ref[...] = s2.astype(jnp.bfloat16)

    # ---- Layer 2 for this row tile: z2 = adj1_tile @ s2 + b2, then logsigmoid.
    z2 = jnp.dot(adj1_ref[...], s2_ref[...],
                 preferred_element_type=jnp.float32) + b2_ref[...]        # [tm, Cp] f32
    # Numerically stable log(sigmoid(z)) = min(z, 0) - log1p(exp(-|z|)), in f32.
    out_ref[...] = jnp.minimum(z2, 0.0) - jnp.log1p(jnp.exp(-jnp.abs(z2)))


def prepare_params(params, lane=LANE):
    """One-time host-side prep: cast weights to bf16, biases to f32, and zero-pad
    the hidden / class dims up to lane-dense widths (done once, not per call)."""
    w1, b1, w2, b2 = params
    nfeat, nhid = w1.shape
    nclass = w2.shape[1]
    hp = _round_up(nhid, lane)
    cp = _round_up(nclass, lane)
    w1p = jnp.zeros((nfeat, hp), jnp.bfloat16).at[:, :nhid].set(w1.astype(jnp.bfloat16))
    b1p = jnp.zeros((1, hp), jnp.float32).at[:, :nhid].set(b1.astype(jnp.float32))
    w2p = jnp.zeros((hp, cp), jnp.bfloat16).at[:nhid, :nclass].set(w2.astype(jnp.bfloat16))
    b2p = jnp.zeros((1, cp), jnp.float32).at[:, :nclass].set(b2.astype(jnp.float32))
    return {"w1": w1p, "b1": b1p, "w2": w2p, "b2": b2p,
            "nhid": nhid, "nclass": nclass}


def gcn_forward(x, adj_list, prepared, dropout_rate=0.5, training=False, tm=128):
    """Full GCN forward (inference mode: dropout is identity).

    x / adj matrices may be f32 or bf16 on entry; matmul inputs are fed to the
    MXU as bf16 with f32 accumulation.
    """
    del dropout_rate, training  # TODO(synk): training-mode dropout not implemented.
    adj0, adj1 = adj_list
    w1p, b1p, w2p, b2p = prepared["w1"], prepared["b1"], prepared["w2"], prepared["b2"]
    nclass = prepared["nclass"]

    n1, n0 = adj0.shape
    n_out = adj1.shape[0]
    nfeat, hp = w1p.shape
    cp = w2p.shape[1]

    # Row tiling of the output / adj1 (pad rows so the grid divides evenly).
    tm_eff = min(tm, _round_up(n_out, 8))
    mp = _round_up(n_out, tm_eff)

    adj0b = adj0.astype(jnp.bfloat16)
    xb = x.astype(jnp.bfloat16)
    adj1b = jnp.zeros((mp, n1), jnp.bfloat16).at[:n_out, :].set(adj1.astype(jnp.bfloat16))

    grid = (mp // tm_eff,)

    flops = 2 * (n0 * nfeat * hp + n1 * n0 * hp + n1 * hp * cp + mp * n1 * cp)
    bytes_accessed = ((adj0b.size + xb.size + w1p.size + w2p.size + adj1b.size) * 2
                      + (b1p.size + b2p.size) * 4 + mp * cp * 4)
    cost = pl.CostEstimate(flops=int(flops),
                           transcendentals=int(2 * mp * cp),
                           bytes_accessed=int(bytes_accessed))

    grid_spec = pltpu.PrefetchScalarGridSpec(
        num_scalar_prefetch=0,
        grid=grid,
        in_specs=[
            pl.BlockSpec((n1, n0), lambda i: (0, 0)),      # adj0 (whole)
            pl.BlockSpec((n0, nfeat), lambda i: (0, 0)),   # x    (whole)
            pl.BlockSpec((nfeat, hp), lambda i: (0, 0)),   # W1
            pl.BlockSpec((1, hp), lambda i: (0, 0)),       # b1
            pl.BlockSpec((hp, cp), lambda i: (0, 0)),      # W2
            pl.BlockSpec((1, cp), lambda i: (0, 0)),       # b2
            pl.BlockSpec((tm_eff, n1), lambda i: (i, 0)),  # adj1 row tile
        ],
        out_specs=pl.BlockSpec((tm_eff, cp), lambda i: (i, 0)),
        scratch_shapes=[pltpu.VMEM((n1, cp), jnp.bfloat16)],
    )

    out_padded = pl.pallas_call(
        _gcn_fused_kernel,
        out_shape=jax.ShapeDtypeStruct((mp, cp), jnp.float32),
        grid_spec=grid_spec,
        compiler_params=pltpu.CompilerParams(
            # "arbitrary": the s2 scratch filled at program_id==0 is reused by all
            # later row tiles, so this axis must not be megacore-sharded.
            dimension_semantics=("arbitrary",),
            # Explicit scoped-VMEM budget: fits v7x's 64 MiB physical VMEM and is
            # above the 16/32 MiB scoped defaults on v5e/v6e.
            vmem_limit_bytes=48 * 1024 * 1024,
        ),
        cost_estimate=cost,
    )(adj0b, xb, w1p, b1p, w2p, b2p, adj1b)

    # Strip lane/row padding.
    return out_padded[:n_out, :nclass]


def init_params(key, nfeat, nhid, nclass):
    """Parameter init matching GraphConvolution shapes (f32 master copies):
       W1: [nfeat, nhid], b1: [nhid], W2: [nhid, nclass], b2: [nclass]."""
    k1, k2, k3, k4 = jax.random.split(key, 4)
    s1 = 1.0 / jnp.sqrt(nhid)
    s2 = 1.0 / jnp.sqrt(nclass)
    w1 = jax.random.uniform(k1, (nfeat, nhid), jnp.float32, -s1, s1)
    b1 = jax.random.uniform(k2, (nhid,), jnp.float32, -s1, s1)
    w2 = jax.random.uniform(k3, (nhid, nclass), jnp.float32, -s2, s2)
    b2 = jax.random.uniform(k4, (nclass,), jnp.float32, -s2, s2)
    return w1, b1, w2, b2


if __name__ == "__main__":
    # Small, module-consistent shapes.
    nfeat, nhid, nclass = 32, 32, 16
    n0, n1, n_out = 64, 48, 32          # sampled node counts per layer

    key = jax.random.PRNGKey(0)
    kx, ka0, ka1, kp = jax.random.split(key, 4)

    x = jax.random.normal(kx, (n0, nfeat), jnp.float32)
    adj0 = jax.random.uniform(ka0, (n1, n0), jnp.float32) / n0    # sampled adj layer 1
    adj1 = jax.random.uniform(ka1, (n_out, n1), jnp.float32) / n1  # sampled adj layer 2

    params = init_params(kp, nfeat, nhid, nclass)
    prepared = prepare_params(params)     # cast/pad weights once (not per forward)

    out = gcn_forward(x, (adj0, adj1), prepared)
    jax.block_until_ready(out)
    assert out.shape == (n_out, nclass)

    # Reference 1: mirrors the kernel's precision (bf16 matmul inputs, f32 accum).
    w1, b1, w2, b2 = params
    s1_r = jnp.dot(x.astype(jnp.bfloat16), w1.astype(jnp.bfloat16),
                   preferred_element_type=jnp.float32)
    z1_r = jnp.dot(adj0.astype(jnp.bfloat16), s1_r.astype(jnp.bfloat16),
                   preferred_element_type=jnp.float32) + b1
    h1_r = jnp.maximum(z1_r, 0.0)
    s2_r = jnp.dot(h1_r.astype(jnp.bfloat16), w2.astype(jnp.bfloat16),
                   preferred_element_type=jnp.float32).astype(jnp.bfloat16)
    z2_r = jnp.dot(adj1.astype(jnp.bfloat16), s2_r,
                   preferred_element_type=jnp.float32) + b2
    ref_bf16 = jax.nn.log_sigmoid(z2_r)
    assert jnp.allclose(out, ref_bf16, rtol=3e-2, atol=3e-2), \
        float(jnp.max(jnp.abs(out - ref_bf16)))

    # Reference 2: pure-f32 semantics of the original module (loose tolerance,
    # since the kernel uses bf16 MXU inputs).
    h1_f = jnp.maximum(adj0 @ (x @ w1) + b1, 0.0)
    ref_f32 = jax.nn.log_sigmoid(adj1 @ (h1_f @ w2) + b2)
    assert jnp.allclose(out, ref_f32, rtol=1e-1, atol=1e-1), \
        float(jnp.max(jnp.abs(out - ref_f32)))

    print("KERNEL_OK")
</pallas_src>

<mosaic_0001>
module attributes {stable_mosaic.version = 11 : i64} {
  func.func @_gcn_fused_kernel(%arg0: i32, %arg1: memref<48x64xbf16, #tpu.memory_space<vmem>>, %arg2: memref<64x32xbf16, #tpu.memory_space<vmem>>, %arg3: memref<32x128xbf16, #tpu.memory_space<vmem>>, %arg4: memref<1x128xf32, #tpu.memory_space<vmem>>, %arg5: memref<128x128xbf16, #tpu.memory_space<vmem>>, %arg6: memref<1x128xf32, #tpu.memory_space<vmem>>, %arg7: memref<32x48xbf16, #tpu.memory_space<vmem>>, %arg8: memref<32x128xf32, #tpu.memory_space<vmem>>, %arg9: memref<48x128xbf16, #tpu.memory_space<vmem>>) attributes {dimension_semantics = [#tpu.dimension_semantics<arbitrary>], iteration_bounds = array<i64: 1>, scalar_prefetch = 0 : i64, scratch_operands = 1 : i64, tpu.core_type = #tpu.core_type<tc>, window_params = [{pipeline_mode = #tpu.pipeline_mode<synchronous>, transform_indices = @transform_0, window_bounds = array<i64: 48, 64>}, {pipeline_mode = #tpu.pipeline_mode<synchronous>, transform_indices = @transform_1, window_bounds = array<i64: 64, 32>}, {pipeline_mode = #tpu.pipeline_mode<synchronous>, transform_indices = @transform_2, window_bounds = array<i64: 32, 128>}, {pipeline_mode = #tpu.pipeline_mode<synchronous>, transform_indices = @transform_3, window_bounds = array<i64: 1, 128>}, {pipeline_mode = #tpu.pipeline_mode<synchronous>, transform_indices = @transform_4, window_bounds = array<i64: 128, 128>}, {pipeline_mode = #tpu.pipeline_mode<synchronous>, transform_indices = @transform_5, window_bounds = array<i64: 1, 128>}, {transform_indices = @transform_6, window_bounds = array<i64: 32, 48>}, {transform_indices = @transform_7, window_bounds = array<i64: 32, 128>}]} {
    %c0_i32 = arith.constant 0 : i32
    %0 = arith.cmpi eq, %arg0, %c0_i32 : i32
    %1 = arith.extui %0 : i1 to i32
    %c0_i32_0 = arith.constant 0 : i32
    %2 = arith.cmpi ne, %1, %c0_i32_0 : i32
    scf.if %2 {
      %c0_10 = arith.constant 0 : index
      %c0_11 = arith.constant 0 : index
      %18 = vector.load %arg2[%c0_10, %c0_11] : memref<64x32xbf16, #tpu.memory_space<vmem>>, vector<64x32xbf16>
      %c0_12 = arith.constant 0 : index
      %c0_13 = arith.constant 0 : index
      %19 = vector.load %arg3[%c0_12, %c0_13] : memref<32x128xbf16, #tpu.memory_space<vmem>>, vector<32x128xbf16>
      %cst_14 = arith.constant dense<0.000000e+00> : vector<64x128xf32>
      %20 = tpu.matmul %18, %19, %cst_14 {dimension_numbers = #tpu.dot_dimension_numbers<[1], [0], [0], [1], [0, 0, 1, 1], [], []>} : vector<64x32xbf16>, vector<32x128xbf16>, vector<64x128xf32> -> vector<64x128xf32>
      %c0_15 = arith.constant 0 : index
      %c0_16 = arith.constant 0 : index
      %21 = vector.load %arg1[%c0_15, %c0_16] : memref<48x64xbf16, #tpu.memory_space<vmem>>, vector<48x64xbf16>
      %22 = arith.truncf %20 : vector<64x128xf32> to vector<64x128xbf16>
      %cst_17 = arith.constant dense<0.000000e+00> : vector<48x128xf32>
      %23 = tpu.matmul %21, %22, %cst_17 {dimension_numbers = #tpu.dot_dimension_numbers<[1], [0], [0], [1], [0, 0, 1, 1], [], []>} : vector<48x64xbf16>, vector<64x128xbf16>, vector<48x128xf32> -> vector<48x128xf32>
      %c0_18 = arith.constant 0 : index
      %c0_19 = arith.constant 0 : index
      %24 = vector.load %arg4[%c0_18, %c0_19] : memref<1x128xf32, #tpu.memory_space<vmem>>, vector<1x128xf32>
      %25 = vector.broadcast %24 : vector<1x128xf32> to vector<48x128xf32>
      %26 = arith.addf %23, %25 : vector<48x128xf32>
      %cst_20 = arith.constant 0.000000e+00 : f32
      %27 = vector.broadcast %cst_20 : f32 to vector<48x128xf32>
      %28 = arith.maximumf %26, %27 : vector<48x128xf32>
      %29 = arith.truncf %28 : vector<48x128xf32> to vector<48x128xbf16>
      %c0_21 = arith.constant 0 : index
      %c0_22 = arith.constant 0 : index
      %30 = vector.load %arg5[%c0_21, %c0_22] : memref<128x128xbf16, #tpu.memory_space<vmem>>, vector<128x128xbf16>
      %cst_23 = arith.constant dense<0.000000e+00> : vector<48x128xf32>
      %31 = tpu.matmul %29, %30, %cst_23 {dimension_numbers = #tpu.dot_dimension_numbers<[1], [0], [0], [1], [0, 0, 1, 1], [], []>} : vector<48x128xbf16>, vector<128x128xbf16>, vector<48x128xf32> -> vector<48x128xf32>
      %32 = arith.truncf %31 : vector<48x128xf32> to vector<48x128xbf16>
      %c0_24 = arith.constant 0 : index
      %c0_25 = arith.constant 0 : index
      %33 = vector.load %arg9[%c0_24, %c0_25] : memref<48x128xbf16, #tpu.memory_space<vmem>>, vector<48x128xbf16>
      tpu.vector_store %arg9[%c0_24, %c0_25], %32 {strides = array<i32>} : memref<48x128xbf16, #tpu.memory_space<vmem>>, vector<48x128xbf16>,
    } else {
    }
    %c0 = arith.constant 0 : index
    %c0_1 = arith.constant 0 : index
    %3 = vector.load %arg7[%c0, %c0_1] : memref<32x48xbf16, #tpu.memory_space<vmem>>, vector<32x48xbf16>
    %c0_2 = arith.constant 0 : index
    %c0_3 = arith.constant 0 : index
    %4 = vector.load %arg9[%c0_2, %c0_3] : memref<48x128xbf16, #tpu.memory_space<vmem>>, vector<48x128xbf16>
    %cst = arith.constant dense<0.000000e+00> : vector<32x128xf32>
    %5 = tpu.matmul %3, %4, %cst {dimension_numbers = #tpu.dot_dimension_numbers<[1], [0], [0], [1], [0, 0, 1, 1], [], []>} : vector<32x48xbf16>, vector<48x128xbf16>, vector<32x128xf32> -> vector<32x128xf32>
    %c0_4 = arith.constant 0 : index
    %c0_5 = arith.constant 0 : index
    %6 = vector.load %arg6[%c0_4, %c0_5] : memref<1x128xf32, #tpu.memory_space<vmem>>, vector<1x128xf32>
    %7 = vector.broadcast %6 : vector<1x128xf32> to vector<32x128xf32>
    %8 = arith.addf %5, %7 : vector<32x128xf32>
    %cst_6 = arith.constant 0.000000e+00 : f32
    %9 = vector.broadcast %cst_6 : f32 to vector<32x128xf32>
    %10 = arith.minimumf %8, %9 : vector<32x128xf32>
    %11 = math.absf %8 : vector<32x128xf32>
    %cst_7 = arith.constant 0.000000e+00 : f32
    %12 = vector.broadcast %cst_7 : f32 to vector<32x128xf32>
    %13 = arith.subf %12, %11 : vector<32x128xf32>
    %14 = math.exp %13 : vector<32x128xf32>
    %15 = math.log1p %14 : vector<32x128xf32>
    %16 = arith.subf %10, %15 : vector<32x128xf32>
    %c0_8 = arith.constant 0 : index
    %c0_9 = arith.constant 0 : index
    %17 = vector.load %arg8[%c0_8, %c0_9] : memref<32x128xf32, #tpu.memory_space<vmem>>, vector<32x128xf32>
    tpu.vector_store %arg8[%c0_8, %c0_9], %16 {strides = array<i32>} : memref<32x128xf32, #tpu.memory_space<vmem>>, vector<32x128xf32>,
    return
  }
  func.func @transform_0(%arg0: i32) -> (i32, i32) {
    %c0_i32 = arith.constant 0 : i32
    %c0_i32_0 = arith.constant 0 : i32
    %c0_i32_1 = arith.constant 0 : i32
    return %c0_i32, %c0_i32_0 : i32, i32
  }
  func.func @transform_1(%arg0: i32) -> (i32, i32) {
    %c0_i32 = arith.constant 0 : i32
    %c0_i32_0 = arith.constant 0 : i32
    %c0_i32_1 = arith.constant 0 : i32
    return %c0_i32, %c0_i32_0 : i32, i32
  }
  func.func @transform_2(%arg0: i32) -> (i32, i32) {
    %c0_i32 = arith.constant 0 : i32
    %c0_i32_0 = arith.constant 0 : i32
    %c0_i32_1 = arith.constant 0 : i32
    return %c0_i32, %c0_i32_0 : i32, i32
  }
  func.func @transform_3(%arg0: i32) -> (i32, i32) {
    %c0_i32 = arith.constant 0 : i32
    %c0_i32_0 = arith.constant 0 : i32
    %c0_i32_1 = arith.constant 0 : i32
    return %c0_i32, %c0_i32_0 : i32, i32
  }
  func.func @transform_4(%arg0: i32) -> (i32, i32) {
    %c0_i32 = arith.constant 0 : i32
    %c0_i32_0 = arith.constant 0 : i32
    %c0_i32_1 = arith.constant 0 : i32
    return %c0_i32, %c0_i32_0 : i32, i32
  }
  func.func @transform_5(%arg0: i32) -> (i32, i32) {
    %c0_i32 = arith.constant 0 : i32
    %c0_i32_0 = arith.constant 0 : i32
    %c0_i32_1 = arith.constant 0 : i32
    return %c0_i32, %c0_i32_0 : i32, i32
  }
  func.func @transform_6(%arg0: i32) -> (i32, i32) {
    %c0_i32 = arith.constant 0 : i32
    %c0_i32_0 = arith.constant 0 : i32
    return %arg0, %c0_i32 : i32, i32
  }
  func.func @transform_7(%arg0: i32) -> (i32, i32) {
    %c0_i32 = arith.constant 0 : i32
    %c0_i32_0 = arith.constant 0 : i32
    return %arg0, %c0_i32 : i32, i32
  }
}

</mosaic_0001>

<llo_original>
// kernel: tpu_custom_call.1
$region0: #{tpu_custom_call.1}
  #allocation0 [shape = 'u32[]', space=smem, size = 0x4, offset = 0x4, fixed_abs, tag = 'smem constant byte address 0x4 - core index']
  #allocation1 [shape = 'u32[144,128]{1,0:T(1,128)}', space=vmem, size = 0x12000, scoped, tag = 'internal scratch']
  #allocation2 [shape = 'bf16[48,128]{1,0:T(16,128)(2,1)}', space=vmem, size = 0x3000, scoped, tag = 'scratch operand']
  %s0 = inlined_call_operand.vmem [shape: bf16[48,64], index: 0, kind: input, shape index: {}]
  %s1 = inlined_call_operand.vmem [shape: bf16[64,32], index: 1, kind: input, shape index: {}]
  %s2 = inlined_call_operand.vmem [shape: bf16[32,128], index: 2, kind: input, shape index: {}]
  %s3 = inlined_call_operand.vmem [shape: f32[1,128], index: 3, kind: input, shape index: {}]
  %s4 = inlined_call_operand.hbm [shape: bf16[128,128], index: 4, kind: input, shape index: {}]
  %s5 = inlined_call_operand.vmem [shape: f32[1,128], index: 5, kind: input, shape index: {}]
  %s6 = inlined_call_operand.vmem [shape: bf16[32,48], index: 6, kind: input, shape index: {}]
  %s7 = inlined_call_operand.hbm [shape: f32[32,128], index: 7, kind: output, shape index: {}]
  %s8 = sld [smem:[#allocation0]]
  $region46: #{tpu_custom_call.1} parent=0
    _
  %s10 = ssub.s32 1, %s8
  %s11 = scalar_select 0, %s10, %s8
  $region1: #{tpu_custom_call.1} parent=0
    #allocation3 [shape = 'u8[32768]{0}', space=vmem, size = 0x8000, scoped, tag = 'input window, operand 4, single buffered']
    #allocation4 [shape = 's32[1]{0}', space=sflag, size = 0x4, scoped, tag = 'scoped memory for tpu_custom_call.1']
    #allocation5 [shape = 's32[1]{0}', space=sflag, size = 0x4, scoped, tag = 'scoped memory for tpu_custom_call.1']
    #allocation6 [shape = 'u8[16384]{0}', space=vmem, size = 0x4000, scoped, tag = 'output window, operand 0, single buffered']
    %12 = vsyncpa [#allocation4], 0
    %13 = vsyncpa [#allocation5], 0
    // Predicated region
    $region2: #{tpu_custom_call.1} parent=1 // pred_check
      _
    $region3: #{tpu_custom_call.1} parent=1 // pred_check_branch
      %15 = sbr.rel (0) target = $region5
    $region4: #{tpu_custom_call.1} parent=1 // pred_region
      _
    $region5: #{tpu_custom_call.1} parent=1 // pred_fallthru
      _
    // Predicated region
    $region6: #{tpu_custom_call.1} parent=1 // pred_check
      _
    $region7: #{tpu_custom_call.1} parent=1 // pred_check_branch
      %17 = sbr.rel (0) target = $region9
    $region8: #{tpu_custom_call.1} parent=1 // pred_region
      _
    $region9: #{tpu_custom_call.1} parent=1 // pred_fallthru
      _
    // Predicated region
    $region10: #{tpu_custom_call.1} parent=1 // pred_check
      _
    $region11: #{tpu_custom_call.1} parent=1 // pred_check_branch
      %19 = sbr.rel (0) target = $region13
    $region12: #{tpu_custom_call.1} parent=1 // pred_region
      _
    $region13: #{tpu_custom_call.1} parent=1 // pred_fallthru
      _
    // Predicated region
    $region14: #{tpu_custom_call.1} parent=1 // pred_check
      _
    $region15: #{tpu_custom_call.1} parent=1 // pred_check_branch
      %21 = sbr.rel (0) target = $region17
    $region16: #{tpu_custom_call.1} parent=1 // pred_region
      _
    $region17: #{tpu_custom_call.1} parent=1 // pred_fallthru
      _
    // Predicated region
    $region18: #{tpu_custom_call.1} parent=1 // pred_check
      _
    $region19: #{tpu_custom_call.1} parent=1 // pred_check_branch
      %23 = sbr.rel (0) target = $region21
    $region20: #{tpu_custom_call.1} parent=1 // pred_region
      %s25 = ssub.s32 1024, 1024
      %26 = vsyncadd [#allocation4], %s25
      %s27 = sshll.u32 [#allocation3], 4
      %s28 = int_to_ptr.vmem [resolvable:$true] %s27
      %33 = dma.hbm_to_vmem [thread:$0]  %s4, 1024, %s28, [#allocation4], 64, 64, 4
    $region21: #{tpu_custom_call.1} parent=1 // pred_fallthru
      _
    // Predicated region
    $region22: #{tpu_custom_call.1} parent=1 // pred_check
      _
    $region23: #{tpu_custom_call.1} parent=1 // pred_check_branch
      %35 = sbr.rel (0) target = $region25
    $region24: #{tpu_custom_call.1} parent=1 // pred_region
      _
    $region25: #{tpu_custom_call.1} parent=1 // pred_fallthru
      _
    // Predicated region
    $region26: #{tpu_custom_call.1} parent=1 // pred_check
      _
    $region27: #{tpu_custom_call.1} parent=1 // pred_check_branch
      %37 = sbr.rel (0) target = $region29
    $region28: #{tpu_custom_call.1} parent=1 // pred_region
      _
    $region29: #{tpu_custom_call.1} parent=1 // pred_fallthru
      _
    // Predicated region
    $region30: #{tpu_custom_call.1} parent=1 // pred_check
      _
    $region31: #{tpu_custom_call.1} parent=1 // pred_check_branch
      %39 = sbr.rel (0) target = $region33
    $region32: #{tpu_custom_call.1} parent=1 // pred_region
      %40 = dma.done [#allocation4], 1024
    $region33: #{tpu_custom_call.1} parent=1 // pred_fallthru
      _
    %p42 = scmp.eq.s32.totalorder 0, 0
    // Predicated region
    $region34: #{tpu_custom_call.1} parent=1 // pred_check
      %p43 = pneg %p42
    $region35: #{tpu_custom_call.1} parent=1 // pred_check_branch
      %45 = sbr.rel (%p43) target = $region37
    $region36: #{tpu_custom_call.1} parent=1 // pred_region
      %v46 = vld [vmem:[%s1] sm:$0xf]
      %v47 = vld [vmem:[%s1 + $0x4] sm:$0xf]
      %v48 = vld [vmem:[%s1 + $0x8] sm:$0xf]
      %v49 = vld [vmem:[%s1 + $0xc] sm:$0xf]
      %v50 = vld [vmem:[%s1 + $0x10] sm:$0xf]
      %v51 = vld [vmem:[%s1 + $0x14] sm:$0xf]
      %v52 = vld [vmem:[%s1 + $0x18] sm:$0xf]
      %v53 = vld [vmem:[%s1 + $0x1c] sm:$0xf]
      %v54 = vld [vmem:[%s2] sm:$0xf]
      %v55 = vld [vmem:[%s2 + $0x4] sm:$0xf]
      %v56 = vld [vmem:[%s2 + $0x8] sm:$0xf]
      %v57 = vld [vmem:[%s2 + $0xc] sm:$0xf]
      %v66 = vunpack.c.l.b16 %v46
      %v67 = vunpack.c.l.b16 %v47
      %v68 = vunpack.c.l.b16 %v48
      %v69 = vunpack.c.l.b16 %v49
      %v70 = vunpack.c.l.b16 %v50
      %v71 = vunpack.c.l.b16 %v51
      %v72 = vunpack.c.l.b16 %v52
      %v73 = vunpack.c.l.b16 %v53
      %v74 = vpack.c.b16 %v67, %v66
      %v75 = vpack.c.b16 %v69, %v68
      %v76 = vpack.c.b16 %v71, %v70
      %v77 = vpack.c.b16 %v73, %v72
      %v82 = vunpack.c.l.b16 %v54
      %v83 = vunpack.c.l.b16 %v55
      %v84 = vunpack.c.l.b16 %v56
      %v85 = vunpack.c.l.b16 %v57
      %v86 = vpack.c.b16 %v83, %v82
      %v87 = vpack.c.b16 %v85, %v84
      %vm90 = vcmask 261120
      %v92 = vsel %vm90, %v74, 0
      %v95 = vsel %vm90, %v75, 0
      %v98 = vsel %vm90, %v76, 0
      %v101 = vsel %vm90, %v77, 0
      %103 = vmatprep.subr.bf16.mxu0 0
      %104 = vmatpush1.bf16.msra.mxu0 %v86
      %105 = vmatprep.subr.bf16.mxu0 0
      %106 = vmatpush1.bf16.msra.mxu0 %v87
      %107 = vmatprep.subr.bf16.mxu0 0
      %108 = vmatpush1.bf16.msra.mxu0 0
      %109 = vmatprep.subr.bf16.mxu0 0
      %110 = vmatpush1.bf16.msra.mxu0 0
      %111 = vmatprep.subr.bf16.mxu0 0
      %112 = vmatpush1.bf16.msra.mxu0 0
      %113 = vmatprep.subr.bf16.mxu0 0
      %114 = vmatpush1.bf16.msra.mxu0 0
      %115 = vmatprep.subr.bf16.mxu0 0
      %116 = vmatpush1.bf16.msra.mxu0 0
      %117 = vmatprep.subr.bf16.mxu0 0
      %118 = vmatpush1.bf16.msra.mxu0 0
      %119 = vmatprep.subr.bf16.mxu0 0
      %120 = vmatpush1.bf16.msra.mxu0 0
      %121 = vmatprep.subr.bf16.mxu0 0
      %122 = vmatpush1.bf16.msra.mxu0 0
      %123 = vmatprep.subr.bf16.mxu0 0
      %124 = vmatpush1.bf16.msra.mxu0 0
      %125 = vmatprep.subr.bf16.mxu0 0
      %126 = vmatpush1.bf16.msra.mxu0 0
      %127 = vmatprep.subr.bf16.mxu0 0
      %128 = vmatpush1.bf16.msra.mxu0 0
      %129 = vmatprep.subr.bf16.mxu0 0
      %130 = vmatpush1.bf16.msra.mxu0 0
      %131 = vmatprep.subr.bf16.mxu0 0
      %132 = vmatpush1.bf16.msra.mxu0 0
      %133 = vmatprep.subr.bf16.mxu0 0
      %134 = vmatpush1.bf16.msra.mxu0 0
      %135 = vmatprep.mubr.bf16.mxu0 0
      %136 = vmatmul.mubr.bf16.gmra.mrb[0].mxu0 %v92
      %v137 = vpop.f32.mrb[0].mxu0
      %v138 = vadd.f32 0.0, %v137
      %v139 = vpop.f32.mrb[0].mxu0
      %v140 = vpop.f32.mrb[0].mxu0
      %v141 = vadd.f32 0.0, %v140
      %v142 = vpop.f32.mrb[0].mxu0
      %143 = vmatprep.mubr.bf16.mxu0 0
      %144 = vmatmul.mubr.bf16.gmra.mrb[0].mxu0 %v95
      %v145 = vpop.f32.mrb[0].mxu0
      %v146 = vadd.f32 0.0, %v145
      %v147 = vpop.f32.mrb[0].mxu0
      %v148 = vpop.f32.mrb[0].mxu0
      %v149 = vadd.f32 0.0, %v148
      %v150 = vpop.f32.mrb[0].mxu0
      %151 = vmatprep.mubr.bf16.mxu0 0
      %152 = vmatmul.mubr.bf16.gmra.mrb[0].mxu0 %v98
      %v153 = vpop.f32.mrb[0].mxu0
      %v154 = vadd.f32 0.0, %v153
      %v155 = vpop.f32.mrb[0].mxu0
      %v156 = vpop.f32.mrb[0].mxu0
      %v157 = vadd.f32 0.0, %v156
      %v158 = vpop.f32.mrb[0].mxu0
      %159 = vmatprep.mubr.bf16.mxu0 0
      %160 = vmatmul.mubr.bf16.gmra.mrb[0].mxu0 %v101
      %v161 = vpop.f32.mrb[0].mxu0
      %v162 = vadd.f32 0.0, %v161
      %v163 = vpop.f32.mrb[0].mxu0
      %v164 = vpop.f32.mrb[0].mxu0
      %v165 = vadd.f32 0.0, %v164
      %v166 = vpop.f32.mrb[0].mxu0
      %167 = vdwg.mxu0
      %v168 = vld [vmem:[%s0] sm:$0xf]
      %v169 = vld [vmem:[%s0 + $0x4] sm:$0xf]
      %v170 = vld [vmem:[%s0 + $0x8] sm:$0xf]
      %v171 = vld [vmem:[%s0 + $0xc] sm:$0xf]
      %v172 = vld [vmem:[%s0 + $0x10] sm:$0xf]
      %v173 = vld [vmem:[%s0 + $0x14] sm:$0xf]
      %v174 = vpack.c.bf16 %v141, %v138
      %v175 = vpack.c.bf16 %v149, %v146
      %v176 = vpack.c.bf16 %v157, %v154
      %v177 = vpack.c.bf16 %v165, %v162
      %v178 = vld [vmem:[%s3] sm:$0x1]
      %v180 = vlaneseq
      %v181 = vshrl.u32 %v180, 7
      %v182 = vsub.s32 0, %v181
      %v183 = vrot.slane %v178, %v182
      %v191 = vunpack.c.l.b16 %v168
      %v192 = vunpack.c.l.b16 %v169
      %v193 = vunpack.c.l.b16 %v170
      %v194 = vunpack.c.l.b16 %v171
      %v195 = vunpack.c.l.b16 %v172
      %v196 = vunpack.c.l.b16 %v173
      %v197 = vpack.c.b16 %v192, %v191
      %v198 = vpack.c.b16 %v194, %v193
      %v199 = vpack.c.b16 %v196, %v195
      %vm200 = vcmask 523264
      %v202 = vsel %vm200, %v197, 0
      %v205 = vsel %vm200, %v198, 0
      %v208 = vsel %vm200, %v199, 0
      %210 = vmatprep.subr.bf16.mxu0 0
      %211 = vmatpush1.bf16.msra.mxu0 %v174
      %212 = vmatprep.subr.bf16.mxu0 0
      %213 = vmatpush1.bf16.msra.mxu0 %v175
      %214 = vmatprep.subr.bf16.mxu0 0
      %215 = vmatpush1.bf16.msra.mxu0 %v176
      %216 = vmatprep.subr.bf16.mxu0 0
      %217 = vmatpush1.bf16.msra.mxu0 %v177
      %218 = vmatprep.subr.bf16.mxu0 0
      %219 = vmatpush1.bf16.msra.mxu0 0
      %220 = vmatprep.subr.bf16.mxu0 0
      %221 = vmatpush1.bf16.msra.mxu0 0
      %222 = vmatprep.subr.bf16.mxu0 0
      %223 = vmatpush1.bf16.msra.mxu0 0
      %224 = vmatprep.subr.bf16.mxu0 0
      %225 = vmatpush1.bf16.msra.mxu0 0
      %226 = vmatprep.subr.bf16.mxu0 0
      %227 = vmatpush1.bf16.msra.mxu0 0
      %228 = vmatprep.subr.bf16.mxu0 0
      %229 = vmatpush1.bf16.msra.mxu0 0
      %230 = vmatprep.subr.bf16.mxu0 0
      %231 = vmatpush1.bf16.msra.mxu0 0
      %232 = vmatprep.subr.bf16.mxu0 0
      %233 = vmatpush1.bf16.msra.mxu0 0
      %234 = vmatprep.subr.bf16.mxu0 0
      %235 = vmatpush1.bf16.msra.mxu0 0
      %236 = vmatprep.subr.bf16.mxu0 0
      %237 = vmatpush1.bf16.msra.mxu0 0
      %238 = vmatprep.subr.bf16.mxu0 0
      %239 = vmatpush1.bf16.msra.mxu0 0
      %240 = vmatprep.subr.bf16.mxu0 0
      %241 = vmatpush1.bf16.msra.mxu0 0
      %242 = vmatprep.mubr.bf16.mxu0 0
      %243 = vmatmul.mubr.bf16.gmra.mrb[0].mxu0 %v202
      %v244 = vpop.f32.mrb[0].mxu0
      %v245 = vadd.f32 %v183, %v244
      %v246 = vpop.f32.mrb[0].mxu0
      %v247 = vpop.f32.mrb[0].mxu0
      %v248 = vadd.f32 %v183, %v247
      %v249 = vpop.f32.mrb[0].mxu0
      %250 = vmatprep.mubr.bf16.mxu0 0
      %251 = vmatmul.mubr.bf16.gmra.mrb[0].mxu0 %v205
      %v252 = vpop.f32.mrb[0].mxu0
      %v253 = vadd.f32 %v183, %v252
      %v254 = vpop.f32.mrb[0].mxu0
      %v255 = vpop.f32.mrb[0].mxu0
      %v256 = vadd.f32 %v183, %v255
      %v257 = vpop.f32.mrb[0].mxu0
      %258 = vmatprep.mubr.bf16.mxu0 0
      %259 = vmatmul.mubr.bf16.gmra.mrb[0].mxu0 %v208
      %v260 = vpop.f32.mrb[0].mxu0
      %v261 = vadd.f32 %v183, %v260
      %v262 = vpop.f32.mrb[0].mxu0
      %v263 = vpop.f32.mrb[0].mxu0
      %v264 = vadd.f32 %v183, %v263
      %v265 = vpop.f32.mrb[0].mxu0
      %266 = vdwg.mxu0
      %v267 = vmax.f32 %v245, 0.0
      %v268 = vmax.f32 %v248, 0.0
      %v269 = vmax.f32 %v253, 0.0
      %v270 = vmax.f32 %v256, 0.0
      %v271 = vmax.f32 %v261, 0.0
      %v272 = vmax.f32 %v264, 0.0
      %v273 = vpack.c.bf16 %v268, %v267
      %v274 = vpack.c.bf16 %v270, %v269
      %v275 = vpack.c.bf16 %v272, %v271
      %v276 = vld [vmem:[#allocation3] sm:$0xf]
      %v277 = vld [vmem:[#allocation3 + $0x4] sm:$0xf]
      %v278 = vld [vmem:[#allocation3 + $0x8] sm:$0xf]
      %v279 = vld [vmem:[#allocation3 + $0xc] sm:$0xf]
      %v280 = vld [vmem:[#allocation3 + $0x10] sm:$0xf]
      %v281 = vld [vmem:[#allocation3 + $0x14] sm:$0xf]
      %v282 = vld [vmem:[#allocation3 + $0x18] sm:$0xf]
      %v283 = vld [vmem:[#allocation3 + $0x1c] sm:$0xf]
      %v284 = vld [vmem:[#allocation3 + $0x20] sm:$0xf]
      %v285 = vld [vmem:[#allocation3 + $0x24] sm:$0xf]
      %v286 = vld [vmem:[#allocation3 + $0x28] sm:$0xf]
      %v287 = vld [vmem:[#allocation3 + $0x2c] sm:$0xf]
      %v288 = vld [vmem:[#allocation3 + $0x30] sm:$0xf]
      %v289 = vld [vmem:[#allocation3 + $0x34] sm:$0xf]
      %v290 = vld [vmem:[#allocation3 + $0x38] sm:$0xf]
      %v291 = vld [vmem:[#allocation3 + $0x3c] sm:$0xf]
      %v308 = vunpack.c.l.b16 %v276
      %v309 = vunpack.c.l.b16 %v277
      %v310 = vunpack.c.l.b16 %v278
      %v311 = vunpack.c.l.b16 %v279
      %v312 = vunpack.c.l.b16 %v280
      %v313 = vunpack.c.l.b16 %v281
      %v314 = vunpack.c.l.b16 %v282
      %v315 = vunpack.c.l.b16 %v283
      %v316 = vunpack.c.l.b16 %v284
      %v317 = vunpack.c.l.b16 %v285
      %v318 = vunpack.c.l.b16 %v286
      %v319 = vunpack.c.l.b16 %v287
      %v320 = vunpack.c.l.b16 %v288
      %v321 = vunpack.c.l.b16 %v289
      %v322 = vunpack.c.l.b16 %v290
      %v323 = vunpack.c.l.b16 %v291
      %v324 = vpack.c.b16 %v309, %v308
      %v325 = vpack.c.b16 %v311, %v310
      %v326 = vpack.c.b16 %v313, %v312
      %v327 = vpack.c.b16 %v315, %v314
      %v328 = vpack.c.b16 %v317, %v316
      %v329 = vpack.c.b16 %v319, %v318
      %v330 = vpack.c.b16 %v321, %v320
      %v331 = vpack.c.b16 %v323, %v322
      %340 = vmatprep.subr.bf16.mxu0 0
      %341 = vmatpush1.bf16.msra.mxu0 %v324
      %342 = vmatprep.subr.bf16.mxu0 0
      %343 = vmatpush1.bf16.msra.mxu0 %v325
      %344 = vmatprep.subr.bf16.mxu0 0
      %345 = vmatpush1.bf16.msra.mxu0 %v326
      %346 = vmatprep.subr.bf16.mxu0 0
      %347 = vmatpush1.bf16.msra.mxu0 %v327
      %348 = vmatprep.subr.bf16.mxu0 0
      %349 = vmatpush1.bf16.msra.mxu0 %v328
      %350 = vmatprep.subr.bf16.mxu0 0
      %351 = vmatpush1.bf16.msra.mxu0 %v329
      %352 = vmatprep.subr.bf16.mxu0 0
      %353 = vmatpush1.bf16.msra.mxu0 %v330
      %354 = vmatprep.subr.bf16.mxu0 0
      %355 = vmatpush1.bf16.msra.mxu0 %v331
      %356 = vmatprep.subr.bf16.mxu0 0
      %357 = vmatpush1.bf16.msra.mxu0 0
      %358 = vmatprep.subr.bf16.mxu0 0
      %359 = vmatpush1.bf16.msra.mxu0 0
      %360 = vmatprep.subr.bf16.mxu0 0
      %361 = vmatpush1.bf16.msra.mxu0 0
      %362 = vmatprep.subr.bf16.mxu0 0
      %363 = vmatpush1.bf16.msra.mxu0 0
      %364 = vmatprep.subr.bf16.mxu0 0
      %365 = vmatpush1.bf16.msra.mxu0 0
      %366 = vmatprep.subr.bf16.mxu0 0
      %367 = vmatpush1.bf16.msra.mxu0 0
      %368 = vmatprep.subr.bf16.mxu0 0
      %369 = vmatpush1.bf16.msra.mxu0 0
      %370 = vmatprep.subr.bf16.mxu0 0
      %371 = vmatpush1.bf16.msra.mxu0 0
      %372 = vmatprep.mubr.bf16.mxu0 0
      %373 = vmatmul.mubr.bf16.gmra.mrb[0].mxu0 %v273
      %v374 = vpop.f32.mrb[0].mxu0
      %v375 = vadd.f32 0.0, %v374
      %v376 = vpop.f32.mrb[0].mxu0
      %v377 = vpop.f32.mrb[0].mxu0
      %v378 = vadd.f32 0.0, %v377
      %v379 = vpop.f32.mrb[0].mxu0
      %380 = vmatprep.mubr.bf16.mxu0 0
      %381 = vmatmul.mubr.bf16.gmra.mrb[0].mxu0 %v274
      %v382 = vpop.f32.mrb[0].mxu0
      %v383 = vadd.f32 0.0, %v382
      %v384 = vpop.f32.mrb[0].mxu0
      %v385 = vpop.f32.mrb[0].mxu0
      %v386 = vadd.f32 0.0, %v385
      %v387 = vpop.f32.mrb[0].mxu0
      %388 = vmatprep.mubr.bf16.mxu0 0
      %389 = vmatmul.mubr.bf16.gmra.mrb[0].mxu0 %v275
      %v390 = vpop.f32.mrb[0].mxu0
      %v391 = vadd.f32 0.0, %v390
      %v392 = vpop.f32.mrb[0].mxu0
      %v393 = vpop.f32.mrb[0].mxu0
      %v394 = vadd.f32 0.0, %v393
      %v395 = vpop.f32.mrb[0].mxu0
      %396 = vdwg.mxu0
      %v397 = vpack.c.bf16 %v378, %v375
      %v398 = vpack.c.bf16 %v386, %v383
      %v399 = vpack.c.bf16 %v394, %v391
      %400 = vst [vmem:[#allocation2] sm:$0xff] %v397
      %401 = vst [vmem:[#allocation2 + $0x8] sm:$0xff] %v398
      %402 = vst [vmem:[#allocation2 + $0x10] sm:$0xff] %v399
    $region37: #{tpu_custom_call.1} parent=1 // pred_fallthru
      _
    %v403 = vld [vmem:[%s6] sm:$0xf]
    %v404 = vld [vmem:[%s6 + $0x4] sm:$0xf]
    %v405 = vld [vmem:[%s6 + $0x8] sm:$0xf]
    %v406 = vld [vmem:[%s6 + $0xc] sm:$0xf]
    %v407 = vld [vmem:[#allocation2] sm:$0xff]
    %v408 = vld [vmem:[#allocation2 + $0x8] sm:$0xff]
    %v409 = vld [vmem:[#allocation2 + $0x10] sm:$0xff]
    %v410 = vld [vmem:[%s5] sm:$0x1]
    %v412 = vlaneseq
    %v413 = vshrl.u32 %v412, 7
    %v414 = vsub.s32 0, %v413
    %v415 = vrot.slane %v410, %v414
    %v421 = vunpack.c.l.b16 %v403
    %v422 = vunpack.c.l.b16 %v404
    %v423 = vunpack.c.l.b16 %v405
    %v424 = vunpack.c.l.b16 %v406
    %v425 = vpack.c.b16 %v422, %v421
    %v426 = vpack.c.b16 %v424, %v423
    %vm427 = vcmask 392192
    %v429 = vsel %vm427, %v425, 0
    %v432 = vsel %vm427, %v426, 0
    %434 = vmatprep.subr.bf16.mxu0 0
    %435 = vmatpush1.bf16.msra.mxu0 %v407
    %436 = vmatprep.subr.bf16.mxu0 0
    %437 = vmatpush1.bf16.msra.mxu0 %v408
    %438 = vmatprep.subr.bf16.mxu0 0
    %439 = vmatpush1.bf16.msra.mxu0 %v409
    %440 = vmatprep.subr.bf16.mxu0 0
    %441 = vmatpush1.bf16.msra.mxu0 0
    %442 = vmatprep.subr.bf16.mxu0 0
    %443 = vmatpush1.bf16.msra.mxu0 0
    %444 = vmatprep.subr.bf16.mxu0 0
    %445 = vmatpush1.bf16.msra.mxu0 0
    %446 = vmatprep.subr.bf16.mxu0 0
    %447 = vmatpush1.bf16.msra.mxu0 0
    %448 = vmatprep.subr.bf16.mxu0 0
    %449 = vmatpush1.bf16.msra.mxu0 0
    %450 = vmatprep.subr.bf16.mxu0 0
    %451 = vmatpush1.bf16.msra.mxu0 0
    %452 = vmatprep.subr.bf16.mxu0 0
    %453 = vmatpush1.bf16.msra.mxu0 0
    %454 = vmatprep.subr.bf16.mxu0 0
    %455 = vmatpush1.bf16.msra.mxu0 0
    %456 = vmatprep.subr.bf16.mxu0 0
    %457 = vmatpush1.bf16.msra.mxu0 0
    %458 = vmatprep.subr.bf16.mxu0 0
    %459 = vmatpush1.bf16.msra.mxu0 0
    %460 = vmatprep.subr.bf16.mxu0 0
    %461 = vmatpush1.bf16.msra.mxu0 0
    %462 = vmatprep.subr.bf16.mxu0 0
    %463 = vmatpush1.bf16.msra.mxu0 0
    %464 = vmatprep.subr.bf16.mxu0 0
    %465 = vmatpush1.bf16.msra.mxu0 0
    %466 = vmatprep.mubr.bf16.mxu0 0
    %467 = vmatmul.mubr.bf16.gmra.mrb[0].mxu0 %v429
    %v468 = vpop.f32.mrb[0].mxu0
    %v469 = vadd.f32 %v415, %v468
    %v470 = vpop.f32.mrb[0].mxu0
    %v471 = vpop.f32.mrb[0].mxu0
    %v472 = vadd.f32 %v415, %v471
    %v473 = vpop.f32.mrb[0].mxu0
    %474 = vmatprep.mubr.bf16.mxu0 0
    %475 = vmatmul.mubr.bf16.gmra.mrb[0].mxu0 %v432
    %v476 = vpop.f32.mrb[0].mxu0
    %v477 = vadd.f32 %v415, %v476
    %v478 = vpop.f32.mrb[0].mxu0
    %v479 = vpop.f32.mrb[0].mxu0
    %v480 = vadd.f32 %v415, %v479
    %v481 = vpop.f32.mrb[0].mxu0
    %482 = vdwg.mxu0
    %v483 = vmin.f32 %v469, 0.0
    %v484 = vmin.f32 %v472, 0.0
    %v485 = vmin.f32 %v477, 0.0
    %v486 = vmin.f32 %v480, 0.0
    %v487 = vand.u32 2147483647, %v469
    %v488 = vand.u32 2147483647, %v472
    %v489 = vand.u32 2147483647, %v477
    %v490 = vand.u32 2147483647, %v480
    %v491 = vsub.f32 0.0, %v487
    %v492 = vsub.f32 0.0, %v488
    %v493 = vsub.f32 0.0, %v489
    %v494 = vsub.f32 0.0, %v490
    %v495 = vmul.f32 %v491, 1.442695
    %v496 = vpow.pop %v495
    %v497 = vmul.f32 %v492, 1.442695
    %v498 = vpow.pop %v497
    %v499 = vmul.f32 %v493, 1.442695
    %v500 = vpow.pop %v499
    %v501 = vmul.f32 %v494, 1.442695
    %v502 = vpow.pop %v501
    %v503 = vadd.f32 %v496, 1.0
    %v504 = vlog2.pop %v503
    %v505 = vmul.f32 %v504, 0.6931472
    %v506 = vmul.f32 -0.5, %v496
    %v507 = vadd.f32 %v506, 1.0
    %v508 = vmul.f32 %v507, %v496
    %v509 = vand.u32 2147483647, %v496
    %vm510 = vcmp.lt.f32.partialorder %v509, 0.0004427343
    %v511 = vsel %vm510, %v508, %v505
    %v512 = vadd.f32 %v498, 1.0
    %v513 = vlog2.pop %v512
    %v514 = vmul.f32 %v513, 0.6931472
    %v515 = vmul.f32 -0.5, %v498
    %v516 = vadd.f32 %v515, 1.0
    %v517 = vmul.f32 %v516, %v498
    %v518 = vand.u32 2147483647, %v498
    %vm519 = vcmp.lt.f32.partialorder %v518, 0.0004427343
    %v520 = vsel %vm519, %v517, %v514
    %v521 = vadd.f32 %v500, 1.0
    %v522 = vlog2.pop %v521
    %v523 = vmul.f32 %v522, 0.6931472
    %v524 = vmul.f32 -0.5, %v500
    %v525 = vadd.f32 %v524, 1.0
    %v526 = vmul.f32 %v525, %v500
    %v527 = vand.u32 2147483647, %v500
    %vm528 = vcmp.lt.f32.partialorder %v527, 0.0004427343
    %v529 = vsel %vm528, %v526, %v523
    %v530 = vadd.f32 %v502, 1.0
    %v531 = vlog2.pop %v530
    %v532 = vmul.f32 %v531, 0.6931472
    %v533 = vmul.f32 -0.5, %v502
    %v534 = vadd.f32 %v533, 1.0
    %v535 = vmul.f32 %v534, %v502
    %v536 = vand.u32 2147483647, %v502
    %vm537 = vcmp.lt.f32.partialorder %v536, 0.0004427343
    %v538 = vsel %vm537, %v535, %v532
    %v539 = vsub.f32 %v483, %v511
    %v540 = vsub.f32 %v484, %v520
    %v541 = vsub.f32 %v485, %v529
    %v542 = vsub.f32 %v486, %v538
    %543 = vst [vmem:[#allocation6] sm:$0xff] %v539
    %544 = vst [vmem:[#allocation6 + $0x8] sm:$0xff] %v540
    %545 = vst [vmem:[#allocation6 + $0x10] sm:$0xff] %v541
    %546 = vst [vmem:[#allocation6 + $0x18] sm:$0xff] %v542
    // Predicated region
    $region38: #{tpu_custom_call.1} parent=1 // pred_check
      _
    $region39: #{tpu_custom_call.1} parent=1 // pred_check_branch
      %548 = sbr.rel (0) target = $region41
    $region40: #{tpu_custom_call.1} parent=1 // pred_region
      %s550 = ssub.s32 512, 512
      %551 = vsyncadd [#allocation5], %s550
      %s552 = sshll.u32 [#allocation6], 4
      %s553 = int_to_ptr.vmem [resolvable:$true] %s552
      %558 = dma.vmem_to_hbm [thread:$0]  %s553, 512, %s7, [#allocation5], 128, 128, 8
    $region41: #{tpu_custom_call.1} parent=1 // pred_fallthru
      _
    // Predicated region
    $region42: #{tpu_custom_call.1} parent=1 // pred_check
      _
    $region43: #{tpu_custom_call.1} parent=1 // pred_check_branch
      %560 = sbr.rel (0) target = $region45
    $region44: #{tpu_custom_call.1} parent=1 // pred_region
      %561 = dma.done [#allocation5], 512
    $region45: #{tpu_custom_call.1} parent=1 // pred_fallthru
      _
    %562 = vsyncpa [#allocation4], 1
    %563 = vsyncpa [#allocation5], 1

</llo_original>
